<compile_context>
chip_gen: v7x
topology: tpu7x:2x2x1
jax: 0.10.0
libtpu: 0.0.40
codegen_flags: <defaults>
</compile_context>

<pallas_src>
import functools

import jax
import jax.numpy as jnp
from jax.experimental import pallas as pl
from jax.experimental.pallas import tpu as pltpu


DEFAULT_BDY = {'val': None, 'diff_fn': None}

_LANE = 128


# ---------------------------------------------------------------------------
# Geometry: 128-aligned per-batch segments, `bpt` segments per width tile
# ---------------------------------------------------------------------------
def _round_up(v, m):
    return (v + m - 1) // m * m


def _tile_geometry(n, cin, cout, length, padding, ksize, *,
                   target_tw=512, tile_budget_bytes=8 << 20):
    lp = length + 2 * padding
    out_len = lp - ksize + 1
    if out_len < 1:
        raise ValueError("kernel size larger than padded input length")
    seg = _round_up(lp, _LANE)                      # 128-aligned batch segment
    # per-column VMEM estimate: double-buffered in/out tiles + f32 accumulator
    bytes_per_col = 4 * (2 * cin + 2 * cout + max(cin, cout))
    bpt_budget = max(1, tile_budget_bytes // (bytes_per_col * seg))
    bpt_target = max(1, target_tw // seg)
    bpt = max(1, min(n, bpt_target, bpt_budget))    # batch segments per tile
    n_pad = _round_up(n, bpt)                       # pad batch with zero segments
    tw = bpt * seg                                  # tile width (multiple of 128)
    num_tiles = n_pad // bpt
    return lp, out_len, seg, bpt, n_pad, tw, num_tiles


# ---------------------------------------------------------------------------
# Wrapper-side layout plumbing (channel-major, batch folded into lanes)
# ---------------------------------------------------------------------------
def _pack_channel_major(x, padding, seg, n_pad):
    """(N, Cin, L) -> (Cin, n_pad*seg) channel-major slab; each batch occupies a
    zero-padded, 128-aligned segment of `seg` columns (x sits at [padding, padding+L))."""
    n, cin, length = x.shape
    xcm = jnp.transpose(x, (1, 0, 2))                                   # (Cin, N, L)
    xcm = jnp.pad(xcm, ((0, 0), (0, n_pad - n),
                        (padding, seg - length - padding)))             # (Cin, n_pad, seg)
    return xcm.reshape(cin, n_pad * seg)


def _unpack_output(out_flat, n, seg, out_len):
    cout = out_flat.shape[0]
    out = out_flat.reshape(cout, -1, seg)[:, :n, :out_len]
    return jnp.transpose(out, (1, 0, 2))                                # (N, Cout, out_len)


# ---------------------------------------------------------------------------
# Kernels
# ---------------------------------------------------------------------------
def _conv_taps(x_ref, w_ref, b_ref, *, ksize, width_c, cout):
    """acc[co, j] = b[co] + sum_{k,ci} W[k,co,ci] * x[ci, j+k], j in [0, width_c)."""
    acc = jnp.zeros((cout, width_c), jnp.float32)
    for k in range(ksize):                       # tiny static unroll (K MXU taps)
        acc = acc + jnp.dot(w_ref[k], x_ref[:, k:k + width_c],
                            preferred_element_type=jnp.float32)
    return acc + b_ref[...]


def _store_tile(o_ref, acc, *, ksize, width_c):
    cout = o_ref.shape[0]
    o_ref[:, :width_c] = acc.astype(o_ref.dtype)
    if ksize > 1:
        # Last K-1 columns of the tile are always discarded junk (seg >= Lp);
        # write zeros so no conv window ever reads past the tile.
        o_ref[:, width_c:] = jnp.zeros((cout, ksize - 1), o_ref.dtype)


def _conv_kernel(x_ref, w_ref, b_ref, o_ref, *, ksize, width_c):
    acc = _conv_taps(x_ref, w_ref, b_ref, ksize=ksize, width_c=width_c,
                     cout=o_ref.shape[0])
    _store_tile(o_ref, acc, ksize=ksize, width_c=width_c)


def _conv_neumann_right_kernel(x_ref, w_ref, b_ref, wcat_ref, o_ref, *,
                               ksize, width_c, seg, bpt, padding, length,
                               out_len, affected):
    """Fused  T = conv(x) + convW(delta),  delta = x[:,:,-1] - conv(x)[:,:,-1]/KNN,
    delta placed at the last input column only.  The correction is ONE small
    matmul (stacked taps x stacked segment deltas; 1/KNN folded into wcat) plus a
    few narrow column read-modify-writes near the right edge of each segment."""
    cout = o_ref.shape[0]
    acc = _conv_taps(x_ref, w_ref, b_ref, ksize=ksize, width_c=width_c, cout=cout)

    # Gather all per-segment delta columns of this tile: (2*Cin, bpt).
    xcols, ycols = [], []
    for s in range(bpt):
        xc = s * seg + padding + length - 1      # column of x[nb, :, -1] in the slab
        yc = s * seg + out_len - 1               # column of conv(x)[nb, :, -1]
        xcols.append(x_ref[:, xc:xc + 1].astype(jnp.float32))
        ycols.append(acc[:, yc:yc + 1])
    dmat = jnp.concatenate([jnp.concatenate(xcols, axis=1),
                            jnp.concatenate(ycols, axis=1)], axis=0)
    # wcat = [W_taps | -1/KNN * W_taps]  ->  corr[a*Cout:(a+1)*Cout, s] = W_t_a @ delta_s
    corr = jnp.dot(wcat_ref[...], dmat, preferred_element_type=jnp.float32)

    _store_tile(o_ref, acc, ksize=ksize, width_c=width_c)

    # Narrow in-place column updates (each affected column is distinct).
    for s in range(bpt):
        for a, (l_out, _tap) in enumerate(affected):
            col = s * seg + l_out
            cval = corr[a * cout:(a + 1) * cout, s:s + 1]
            o_ref[:, col:col + 1] = o_ref[:, col:col + 1] + cval.astype(o_ref.dtype)


# ---------------------------------------------------------------------------
# pallas_call wrappers
# ---------------------------------------------------------------------------
_COMPILER_PARAMS = pltpu.CompilerParams(
    dimension_semantics=("parallel",),            # shards tiles across v7x's 2 TCs
    vmem_limit_bytes=32 * 1024 * 1024)            # explicit (v5e 16 MiB scoped default)


def _common_specs(cin, cout, ksize, tw):
    in_specs = [
        pl.BlockSpec((cin, tw), lambda t: (0, t)),              # x slab tile
        pl.BlockSpec((ksize, cout, cin), lambda t: (0, 0, 0)),  # weights (resident)
        pl.BlockSpec((cout, 1), lambda t: (0, 0)),              # bias (resident)
    ]
    out_specs = pl.BlockSpec((cout, tw), lambda t: (0, t))
    return in_specs, out_specs


def conv1d_pallas(x, weight, bias, padding, *, target_tw=512):
    """torch.nn.Conv1d(x), stride=1, given padding, as a width-tiled Pallas call."""
    n, cin, length = x.shape
    cout, cin_w, ksize = weight.shape
    if cin_w != cin:
        raise ValueError("weight Cin does not match input Cin")
    _, out_len, seg, _, n_pad, tw, num_tiles = _tile_geometry(
        n, cin, cout, length, padding, ksize, target_tw=target_tw)

    xp = _pack_channel_major(x, padding, seg, n_pad)            # (Cin, n_pad*seg)
    w_t = jnp.transpose(weight, (2, 0, 1)).astype(jnp.float32)  # (K, Cout, Cin)
    b2 = bias.reshape(cout, 1).astype(jnp.float32)

    in_specs, out_specs = _common_specs(cin, cout, ksize, tw)
    kernel = functools.partial(_conv_kernel, ksize=ksize, width_c=tw - ksize + 1)
    out_flat = pl.pallas_call(
        kernel,
        out_shape=jax.ShapeDtypeStruct((cout, n_pad * seg), x.dtype),
        grid=(num_tiles,),
        in_specs=in_specs,
        out_specs=out_specs,
        compiler_params=_COMPILER_PARAMS,
    )(xp, w_t, b2)
    return _unpack_output(out_flat, n, seg, out_len)


def conv1d_neumann_right_pallas(x, weight, bias, padding, inv_knn, *, target_tw=512):
    """Fused gauss-elimination chain for left=None, right!=None in ONE launch:
       T = layer( x.at[:,:,-1].set(2*x[:,:,-1] - layer(x)[:,:,-1]/KNN) )."""
    n, cin, length = x.shape
    cout, cin_w, ksize = weight.shape
    if cin_w != cin:
        raise ValueError("weight Cin does not match input Cin")
    if cout != cin:
        raise ValueError("Neumann right-edge correction requires Cin == Cout "
                         "(delta mixes input and output channels)")
    _, out_len, seg, bpt, n_pad, tw, num_tiles = _tile_geometry(
        n, cin, cout, length, padding, ksize, target_tw=target_tw)

    # Output columns whose conv window reads the (modified) last input column.
    pxl = padding + length - 1
    affected = tuple((l, pxl - l) for l in range(out_len) if 0 <= pxl - l < ksize)
    if not affected:             # degenerate: no output depends on the last input column
        return conv1d_pallas(x, weight, bias, padding, target_tw=target_tw)

    xp = _pack_channel_major(x, padding, seg, n_pad)
    w_t = jnp.transpose(weight, (2, 0, 1)).astype(jnp.float32)
    b2 = bias.reshape(cout, 1).astype(jnp.float32)
    # Stacked correction weights with 1/KNN folded in: (A*Cout, 2*Cin).
    wc = jnp.concatenate([weight[:, :, t] for (_, t) in affected], axis=0)
    wcat = jnp.concatenate([wc, -inv_knn * wc], axis=1).astype(jnp.float32)

    in_specs, out_specs = _common_specs(cin, cout, ksize, tw)
    in_specs = in_specs + [pl.BlockSpec(wcat.shape, lambda t: (0, 0))]
    kernel = functools.partial(
        _conv_neumann_right_kernel, ksize=ksize, width_c=tw - ksize + 1,
        seg=seg, bpt=bpt, padding=padding, length=length, out_len=out_len,
        affected=affected)
    out_flat = pl.pallas_call(
        kernel,
        out_shape=jax.ShapeDtypeStruct((cout, n_pad * seg), x.dtype),
        grid=(num_tiles,),
        in_specs=in_specs,
        out_specs=out_specs,
        compiler_params=_COMPILER_PARAMS,
    )(xp, w_t, b2, wcat)
    return _unpack_output(out_flat, n, seg, out_len)


# ---------------------------------------------------------------------------
# neukernelcorrection1d (forward-pass semantics of the PyTorch module)
# ---------------------------------------------------------------------------
class NeuKernelCorrection1D:
    def __init__(self, weight, bias, padding, tol=1e-7):
        self.weight = jnp.asarray(weight, jnp.float32)   # (Cout, Cin, K)
        self.bias = jnp.asarray(bias, jnp.float32)       # (Cout,)
        self.padding = int(padding)
        self.tol = tol

    def layer(self, x):
        return conv1d_pallas(x, self.weight, self.bias, self.padding)

    # Analytic boundary-probe constants: e1/eN are one-hot, so layer(e1)/layer(eN)
    # corner values are bias[0] + a column-sum of a single weight tap.
    # -> no probe convolutions / launches at all.
    def _probe_constants(self, length):
        _, _, ksize = self.weight.shape
        pad = self.padding
        out_len = length + 2 * pad - ksize + 1

        def tap_sum(t):
            if 0 <= t < ksize:
                return jnp.sum(self.weight[0, :, t])
            return jnp.zeros((), jnp.float32)

        b0 = self.bias[0]
        K00 = b0 + tap_sum(pad)                                  # layer(e1)[0,0,0]
        KN0 = b0 + tap_sum(pad - (out_len - 1))                  # layer(e1)[0,0,-1]
        K0N = b0 + tap_sum(length - 1 + pad)                     # layer(eN)[0,0,0]
        KNN = b0 + tap_sum(length - 1 + pad - (out_len - 1))     # layer(eN)[0,0,-1]
        # NOTE: matches the PyTorch reference clamp (sign flip for small negatives).
        K00 = jnp.where(jnp.abs(K00) < self.tol, self.tol, K00)
        KNN = jnp.where(jnp.abs(KNN) < self.tol, self.tol, KNN)
        return K00, KN0, K0N, KNN

    def gauss_elimination(self, x, left, right):
        length = x.shape[-1]
        K00, KN0, K0N, KNN = self._probe_constants(length)

        if left is not None:
            # General path (not used by forward(), which always passes left=None):
            # faithful non-fused composition of Pallas conv launches.
            Kx = self.layer(x)
            tilde_K00 = K00 - KN0 * K0N / KNN
            tilde_K00 = jnp.where(jnp.abs(tilde_K00) < self.tol, self.tol, tilde_K00)
            new0 = 2.0 * x[:, :, 0] - (1.0 / tilde_K00) * (
                Kx[:, :, 0] - Kx[:, :, -1] * K0N / KNN + K0N * x[:, :, -1])
            T2_left_x = x.at[:, :, 0].set(new0)
            Ky = self.layer(T2_left_x)
            if right is not None:
                T2_right_y = T2_left_x.at[:, :, -1].set(
                    2.0 * T2_left_x[:, :, -1] - Ky[:, :, -1] / KNN)
            else:
                T2_right_y = T2_left_x
            return self.layer(T2_right_y)

        # left is None (the path forward() uses)
        if right is None:
            return self.layer(x)
        # Fully fused: Ky-last-column + right-edge correction + final conv, one launch.
        return conv1d_neumann_right_pallas(
            x, self.weight, self.bias, self.padding, 1.0 / KNN)

    def forward(self, x, left=DEFAULT_BDY, right=DEFAULT_BDY):
        if left is None:
            left = DEFAULT_BDY
        if right is None:
            right = DEFAULT_BDY

        if left['val'] is None and right['val'] is None:
            return self.layer(x)

        # NOTE: matches the PyTorch reference, which hard-codes left=None here.
        T = self.gauss_elimination(x, None, right['val'])
        # diff_fn are arbitrary user callables on the full output -> plain JAX.
        inv_c0_l, diff_l = left['diff_fn'](T)
        inv_c0_r, diff_r = right['diff_fn'](T)
        T = T.at[..., 0].set(left['val'] * inv_c0_l - diff_l)
        T = T.at[..., -1].set(right['val'] * inv_c0_r - diff_r)
        return T / 2.0


# PyTorch-style lowercase alias
neukernelcorrection1d = NeuKernelCorrection1D


# Example Neumann boundary `diff_fn`s (first-order one-sided differences, unit
# spacing) — user inputs to forward(), run as plain JAX outside the kernel.
def left_neumann_diff_fn(T, h=1.0):
    return -h, -T[..., 1]


def right_neumann_diff_fn(T, h=1.0):
    return h, -T[..., -2]


# ---------------------------------------------------------------------------
# Pure-JAX reference of the PyTorch module (correctness check only)
# ---------------------------------------------------------------------------
def _conv1d_ref(x, weight, bias, padding):
    out = jax.lax.conv_general_dilated(
        x, weight, window_strides=(1,), padding=[(padding, padding)],
        dimension_numbers=('NCH', 'OIH', 'NCH'))
    return out + bias[None, :, None]


def _forward_ref(x, weight, bias, padding, left, right, tol=1e-7):
    layer = lambda z: _conv1d_ref(z, weight, bias, padding)
    if left['val'] is None and right['val'] is None:
        return layer(x)
    eN = jnp.zeros_like(x).at[:, :, -1].set(1.0)
    KNN = layer(eN)[0, 0, -1]
    KNN = jnp.where(jnp.abs(KNN) < tol, tol, KNN)
    if right['val'] is not None:
        Ky = layer(x)
        y = x.at[:, :, -1].set(2.0 * x[:, :, -1] - Ky[:, :, -1] / KNN)
    else:
        y = x
    T = layer(y)
    inv_c0_l, dl = left['diff_fn'](T)
    inv_c0_r, dr = right['diff_fn'](T)
    T = T.at[..., 0].set(left['val'] * inv_c0_l - dl)
    T = T.at[..., -1].set(right['val'] * inv_c0_r - dr)
    return T / 2.0


# ---------------------------------------------------------------------------
if __name__ == "__main__":
    key = jax.random.PRNGKey(0)
    k_x, k_w, k_b, k_x2 = jax.random.split(key, 4)

    N, C, L = 2, 4, 16          # batch, channels, length
    KSIZE, PAD = 3, 1           # "same" conv

    x = jax.random.normal(k_x, (N, C, L), dtype=jnp.float32)
    weight = 0.1 * jax.random.normal(k_w, (C, C, KSIZE), dtype=jnp.float32)
    bias = 0.5 + 0.1 * jax.random.normal(k_b, (C,), dtype=jnp.float32)

    module = NeuKernelCorrection1D(weight, bias, padding=PAD)

    left_bdy = {'val': jnp.float32(0.5), 'diff_fn': left_neumann_diff_fn}
    right_bdy = {'val': jnp.float32(-0.25), 'diff_fn': right_neumann_diff_fn}

    # Path 1: no boundary values -> plain (tiled) Pallas conv layer.
    y_plain = jax.block_until_ready(module.forward(x))
    # Path 2: Neumann-corrected path -> ONE fused Pallas launch + tiny JAX glue.
    y_corr = jax.block_until_ready(module.forward(x, left=left_bdy, right=right_bdy))

    assert y_plain.shape == (N, C, L) and y_corr.shape == (N, C, L)
    assert bool(jnp.all(jnp.isfinite(y_plain)))
    assert bool(jnp.all(jnp.isfinite(y_corr)))

    # Correctness check against a pure-JAX reference of the PyTorch module.
    y_plain_ref = _forward_ref(x, weight, bias, PAD, dict(DEFAULT_BDY), dict(DEFAULT_BDY))
    y_corr_ref = _forward_ref(x, weight, bias, PAD, left_bdy, right_bdy)
    assert bool(jnp.allclose(y_plain, y_plain_ref, atol=1e-4, rtol=1e-4))
    assert bool(jnp.allclose(y_corr, y_corr_ref, atol=1e-4, rtol=1e-4))

    # Exercise the multi-tile grid + padded-batch path (N=5 -> 2 tiles of 4 segments).
    x2 = jax.random.normal(k_x2, (5, C, L), dtype=jnp.float32)
    y2_plain = jax.block_until_ready(module.forward(x2))
    y2_corr = jax.block_until_ready(module.forward(x2, left=left_bdy, right=right_bdy))
    y2_plain_ref = _forward_ref(x2, weight, bias, PAD, dict(DEFAULT_BDY), dict(DEFAULT_BDY))
    y2_corr_ref = _forward_ref(x2, weight, bias, PAD, left_bdy, right_bdy)
    assert bool(jnp.allclose(y2_plain, y2_plain_ref, atol=1e-4, rtol=1e-4))
    assert bool(jnp.allclose(y2_corr, y2_corr_ref, atol=1e-4, rtol=1e-4))

    print("KERNEL_OK")
</pallas_src>

<mosaic_0001>
module attributes {stable_mosaic.version = 11 : i64} {
  func.func @_conv_kernel(%arg0: i32, %arg1: memref<4x256xf32, #tpu.memory_space<vmem>>, %arg2: memref<3x4x4xf32, #tpu.memory_space<vmem>>, %arg3: memref<4x1xf32, #tpu.memory_space<vmem>>, %arg4: memref<4x256xf32, #tpu.memory_space<vmem>>) attributes {dimension_semantics = [#tpu.dimension_semantics<parallel>], iteration_bounds = array<i64: 1>, scalar_prefetch = 0 : i64, scratch_operands = 0 : i64, tpu.core_type = #tpu.core_type<tc>, window_params = [{transform_indices = @transform_0, window_bounds = array<i64: 4, 256>}, {pipeline_mode = #tpu.pipeline_mode<synchronous>, transform_indices = @transform_1, window_bounds = array<i64: 3, 4, 4>}, {pipeline_mode = #tpu.pipeline_mode<synchronous>, transform_indices = @transform_2, window_bounds = array<i64: 4, 1>}, {transform_indices = @transform_3, window_bounds = array<i64: 4, 256>}]} {
    %cst = arith.constant 0.000000e+00 : f32
    %0 = vector.broadcast %cst : f32 to vector<4x254xf32>
    %c0 = arith.constant 0 : index
    %c0_0 = arith.constant 0 : index
    %c0_1 = arith.constant 0 : index
    %1 = vector.load %arg2[%c0, %c0_0, %c0_1] : memref<3x4x4xf32, #tpu.memory_space<vmem>>, vector<1x4x4xf32>
    %2 = vector.shape_cast %1 : vector<1x4x4xf32> to vector<4x4xf32>
    %c0_2 = arith.constant 0 : index
    %c0_3 = arith.constant 0 : index
    %3 = vector.load %arg1[%c0_2, %c0_3] : memref<4x256xf32, #tpu.memory_space<vmem>>, vector<4x254xf32>
    %cst_4 = arith.constant dense<0.000000e+00> : vector<4x254xf32>
    %4 = tpu.matmul %2, %3, %cst_4 {dimension_numbers = #tpu.dot_dimension_numbers<[1], [0], [0], [1], [0, 0, 1, 1], [], []>} : vector<4x4xf32>, vector<4x254xf32>, vector<4x254xf32> -> vector<4x254xf32>
    %5 = arith.addf %0, %4 : vector<4x254xf32>
    %c1 = arith.constant 1 : index
    %c0_5 = arith.constant 0 : index
    %c0_6 = arith.constant 0 : index
    %6 = vector.load %arg2[%c1, %c0_5, %c0_6] : memref<3x4x4xf32, #tpu.memory_space<vmem>>, vector<1x4x4xf32>
    %7 = vector.shape_cast %6 : vector<1x4x4xf32> to vector<4x4xf32>
    %c0_7 = arith.constant 0 : index
    %c1_8 = arith.constant 1 : index
    %8 = vector.load %arg1[%c0_7, %c1_8] : memref<4x256xf32, #tpu.memory_space<vmem>>, vector<4x254xf32>
    %cst_9 = arith.constant dense<0.000000e+00> : vector<4x254xf32>
    %9 = tpu.matmul %7, %8, %cst_9 {dimension_numbers = #tpu.dot_dimension_numbers<[1], [0], [0], [1], [0, 0, 1, 1], [], []>} : vector<4x4xf32>, vector<4x254xf32>, vector<4x254xf32> -> vector<4x254xf32>
    %10 = arith.addf %5, %9 : vector<4x254xf32>
    %c2 = arith.constant 2 : index
    %c0_10 = arith.constant 0 : index
    %c0_11 = arith.constant 0 : index
    %11 = vector.load %arg2[%c2, %c0_10, %c0_11] : memref<3x4x4xf32, #tpu.memory_space<vmem>>, vector<1x4x4xf32>
    %12 = vector.shape_cast %11 : vector<1x4x4xf32> to vector<4x4xf32>
    %c0_12 = arith.constant 0 : index
    %c2_13 = arith.constant 2 : index
    %13 = vector.load %arg1[%c0_12, %c2_13] : memref<4x256xf32, #tpu.memory_space<vmem>>, vector<4x254xf32>
    %cst_14 = arith.constant dense<0.000000e+00> : vector<4x254xf32>
    %14 = tpu.matmul %12, %13, %cst_14 {dimension_numbers = #tpu.dot_dimension_numbers<[1], [0], [0], [1], [0, 0, 1, 1], [], []>} : vector<4x4xf32>, vector<4x254xf32>, vector<4x254xf32> -> vector<4x254xf32>
    %15 = arith.addf %10, %14 : vector<4x254xf32>
    %c0_15 = arith.constant 0 : index
    %c0_16 = arith.constant 0 : index
    %16 = vector.load %arg3[%c0_15, %c0_16] : memref<4x1xf32, #tpu.memory_space<vmem>>, vector<4x1xf32>
    %17 = vector.broadcast %16 : vector<4x1xf32> to vector<4x254xf32>
    %18 = arith.addf %15, %17 : vector<4x254xf32>
    %c0_17 = arith.constant 0 : index
    %c0_18 = arith.constant 0 : index
    %19 = vector.load %arg4[%c0_17, %c0_18] : memref<4x256xf32, #tpu.memory_space<vmem>>, vector<4x254xf32>
    tpu.vector_store %arg4[%c0_17, %c0_18], %18 {strides = array<i32>} : memref<4x256xf32, #tpu.memory_space<vmem>>, vector<4x254xf32>,
    %cst_19 = arith.constant 0.000000e+00 : f32
    %20 = vector.broadcast %cst_19 : f32 to vector<4x2xf32>
    %c0_20 = arith.constant 0 : index
    %c254 = arith.constant 254 : index
    %21 = vector.load %arg4[%c0_20, %c254] : memref<4x256xf32, #tpu.memory_space<vmem>>, vector<4x2xf32>
    tpu.vector_store %arg4[%c0_20, %c254], %20 {strides = array<i32>} : memref<4x256xf32, #tpu.memory_space<vmem>>, vector<4x2xf32>,
    return
  }
  func.func @transform_0(%arg0: i32) -> (i32, i32) {
    %c0_i32 = arith.constant 0 : i32
    %c0_i32_0 = arith.constant 0 : i32
    return %c0_i32, %arg0 : i32, i32
  }
  func.func @transform_1(%arg0: i32) -> (i32, i32, i32) {
    %c0_i32 = arith.constant 0 : i32
    %c0_i32_0 = arith.constant 0 : i32
    %c0_i32_1 = arith.constant 0 : i32
    %c0_i32_2 = arith.constant 0 : i32
    return %c0_i32, %c0_i32_0, %c0_i32_1 : i32, i32, i32
  }
  func.func @transform_2(%arg0: i32) -> (i32, i32) {
    %c0_i32 = arith.constant 0 : i32
    %c0_i32_0 = arith.constant 0 : i32
    %c0_i32_1 = arith.constant 0 : i32
    return %c0_i32, %c0_i32_0 : i32, i32
  }
  func.func @transform_3(%arg0: i32) -> (i32, i32) {
    %c0_i32 = arith.constant 0 : i32
    %c0_i32_0 = arith.constant 0 : i32
    return %c0_i32, %arg0 : i32, i32
  }
}

</mosaic_0001>

<llo_original>
// kernel: tpu_custom_call.1
$region0: #{tpu_custom_call.1}
  #allocation0 [shape = 'u32[]', space=smem, size = 0x4, offset = 0x4, fixed_abs, tag = 'smem constant byte address 0x4 - core index']
  #allocation1 [shape = 'u32[144,128]{1,0:T(1,128)}', space=vmem, size = 0x12000, scoped, tag = 'internal scratch']
  %s0 = inlined_call_operand.hbm [shape: f32[4,256], index: 0, kind: input, shape index: {}]
  %s1 = inlined_call_operand.hbm [shape: f32[3,4,4], index: 1, kind: input, shape index: {}]
  %s2 = inlined_call_operand.vmem [shape: f32[4,1], index: 2, kind: input, shape index: {}]
  %s3 = inlined_call_operand.hbm [shape: f32[4,256], index: 3, kind: output, shape index: {}]
  %s4 = sld [smem:[#allocation0]]
  $region30: #{tpu_custom_call.1} parent=0
    _
  %s6 = ssub.s32 1, %s4
  %s7 = scalar_select 0, %s6, %s4
  $region1: #{tpu_custom_call.1} parent=0
    #allocation2 [shape = 'u8[4096]{0}', space=vmem, size = 0x1000, scoped, tag = 'input window, operand 0, single buffered']
    #allocation3 [shape = 's32[1]{0}', space=sflag, size = 0x4, scoped, tag = 'scoped memory for tpu_custom_call.1']
    #allocation4 [shape = 's32[1]{0}', space=sflag, size = 0x4, scoped, tag = 'scoped memory for tpu_custom_call.1']
    #allocation5 [shape = 'u8[6144]{0}', space=vmem, size = 0x1800, scoped, tag = 'input window, operand 1, single buffered']
    #allocation6 [shape = 's32[1]{0}', space=sflag, size = 0x4, scoped, tag = 'scoped memory for tpu_custom_call.1']
    #allocation7 [shape = 'u8[4096]{0}', space=vmem, size = 0x1000, scoped, tag = 'output window, operand 0, single buffered']
    %8 = vsyncpa [#allocation3], 0
    %9 = vsyncpa [#allocation6], 0
    %10 = vsyncpa [#allocation4], 0
    // Predicated region
    $region2: #{tpu_custom_call.1} parent=1 // pred_check
      _
    $region3: #{tpu_custom_call.1} parent=1 // pred_check_branch
      %12 = sbr.rel (0) target = $region5
    $region4: #{tpu_custom_call.1} parent=1 // pred_region
      %s14 = ssub.s32 128, 128
      %15 = vsyncadd [#allocation3], %s14
      %s17 = sshll.u32 [#allocation2], 4
      %s18 = int_to_ptr.vmem [resolvable:$true] %s17
      %20 = dma.hbm_to_vmem [thread:$0]  %s0, 128, %s18, [#allocation3]
    $region5: #{tpu_custom_call.1} parent=1 // pred_fallthru
      _
    // Predicated region
    $region6: #{tpu_custom_call.1} parent=1 // pred_check
      _
    $region7: #{tpu_custom_call.1} parent=1 // pred_check_branch
      %22 = sbr.rel (0) target = $region9
    $region8: #{tpu_custom_call.1} parent=1 // pred_region
      %s24 = ssub.s32 192, 192
      %25 = vsyncadd [#allocation6], %s24
      %s26 = sshll.u32 [#allocation5], 4
      %s27 = int_to_ptr.vmem [resolvable:$true] %s26
      %32 = dma.hbm_to_vmem [thread:$0]  %s1, 192, %s27, [#allocation6], 64, 64, 4
    $region9: #{tpu_custom_call.1} parent=1 // pred_fallthru
      _
    // Predicated region
    $region10: #{tpu_custom_call.1} parent=1 // pred_check
      _
    $region11: #{tpu_custom_call.1} parent=1 // pred_check_branch
      %34 = sbr.rel (0) target = $region13
    $region12: #{tpu_custom_call.1} parent=1 // pred_region
      _
    $region13: #{tpu_custom_call.1} parent=1 // pred_fallthru
      _
    // Predicated region
    $region14: #{tpu_custom_call.1} parent=1 // pred_check
      _
    $region15: #{tpu_custom_call.1} parent=1 // pred_check_branch
      %36 = sbr.rel (0) target = $region17
    $region16: #{tpu_custom_call.1} parent=1 // pred_region
      %37 = dma.done [#allocation3], 128
    $region17: #{tpu_custom_call.1} parent=1 // pred_fallthru
      _
    // Predicated region
    $region18: #{tpu_custom_call.1} parent=1 // pred_check
      _
    $region19: #{tpu_custom_call.1} parent=1 // pred_check_branch
      %39 = sbr.rel (0) target = $region21
    $region20: #{tpu_custom_call.1} parent=1 // pred_region
      %40 = dma.done [#allocation6], 192
    $region21: #{tpu_custom_call.1} parent=1 // pred_fallthru
      _
    %v41 = vld [vmem:[#allocation5] sm:$0xf]
    %v42 = vld [vmem:[#allocation2] sm:$0xff]
    %s43 = scalar_lea.vmem [#allocation5], 4
    %v44 = vld [vmem:[%s43] sm:$0xf]
    %v46 = vcombine.high %v42, %v42
    %47 = vrot.lane.b32.xlu0 %v42, 127
    %v48 = vpop.permute.xlu0 %47
    %49 = vrot.lane.b32.xlu0 %v46, 127
    %v50 = vpop.permute.xlu0 %49
    %vm51 = vcmask 1039360
    %v52 = vsel %vm51, %v48, %v50
    %vm53 = vcmask 31744
    %v55 = vsel %vm53, %v44, 0
    %vm57 = vcmask 1043456
    %v58 = vsel %vm57, %v52, 0
    %v60 = vsel %vm57, %v50, 0
    %62 = vmatprep.subr.mxu0 %v60
    %63 = vmatpush1.msra.mxu0 %v58
    %64 = vmatprep.subr.mxu0 0.0
    %65 = vmatpush1.msra.mxu0 0.0
    %66 = vmatprep.subr.mxu0 0.0
    %67 = vmatpush1.msra.mxu0 0.0
    %68 = vmatprep.subr.mxu0 0.0
    %69 = vmatpush1.msra.mxu0 0.0
    %70 = vmatprep.subr.mxu0 0.0
    %71 = vmatpush1.msra.mxu0 0.0
    %72 = vmatprep.subr.mxu0 0.0
    %73 = vmatpush1.msra.mxu0 0.0
    %74 = vmatprep.subr.mxu0 0.0
    %75 = vmatpush1.msra.mxu0 0.0
    %76 = vmatprep.subr.mxu0 0.0
    %77 = vmatpush1.msra.mxu0 0.0
    %78 = vmatprep.subr.mxu0 0.0
    %79 = vmatpush1.msra.mxu0 0.0
    %80 = vmatprep.subr.mxu0 0.0
    %81 = vmatpush1.msra.mxu0 0.0
    %82 = vmatprep.subr.mxu0 0.0
    %83 = vmatpush1.msra.mxu0 0.0
    %84 = vmatprep.subr.mxu0 0.0
    %85 = vmatpush1.msra.mxu0 0.0
    %86 = vmatprep.subr.mxu0 0.0
    %87 = vmatpush1.msra.mxu0 0.0
    %88 = vmatprep.subr.mxu0 0.0
    %89 = vmatpush1.msra.mxu0 0.0
    %90 = vmatprep.subr.mxu0 0.0
    %91 = vmatpush1.msra.mxu0 0.0
    %92 = vmatprep.subr.mxu0 0.0
    %93 = vmatpush1.msra.mxu0 0.0
    %94 = vmatprep.subr.mxu0 0.0
    %95 = vmatpush1.msra.mxu0 0.0
    %96 = vmatprep.subr.mxu0 0.0
    %97 = vmatpush1.msra.mxu0 0.0
    %98 = vmatprep.subr.mxu0 0.0
    %99 = vmatpush1.msra.mxu0 0.0
    %100 = vmatprep.subr.mxu0 0.0
    %101 = vmatpush1.msra.mxu0 0.0
    %102 = vmatprep.subr.mxu0 0.0
    %103 = vmatpush1.msra.mxu0 0.0
    %104 = vmatprep.subr.mxu0 0.0
    %105 = vmatpush1.msra.mxu0 0.0
    %106 = vmatprep.subr.mxu0 0.0
    %107 = vmatpush1.msra.mxu0 0.0
    %108 = vmatprep.subr.mxu0 0.0
    %109 = vmatpush1.msra.mxu0 0.0
    %110 = vmatprep.subr.mxu0 0.0
    %111 = vmatpush1.msra.mxu0 0.0
    %112 = vmatprep.subr.mxu0 0.0
    %113 = vmatpush1.msra.mxu0 0.0
    %114 = vmatprep.subr.mxu0 0.0
    %115 = vmatpush1.msra.mxu0 0.0
    %116 = vmatprep.subr.mxu0 0.0
    %117 = vmatpush1.msra.mxu0 0.0
    %118 = vmatprep.subr.mxu0 0.0
    %119 = vmatpush1.msra.mxu0 0.0
    %120 = vmatprep.subr.mxu0 0.0
    %121 = vmatpush1.msra.mxu0 0.0
    %122 = vmatprep.subr.mxu0 0.0
    %123 = vmatpush1.msra.mxu0 0.0
    %124 = vmatprep.subr.mxu0 0.0
    %125 = vmatpush1.msra.mxu0 0.0
    %126 = vmatprep.mubr.f32.mxu0 0.0
    %127 = vmatmul.mubr.f32.gmra.mrb[0].mxu0 %v55
    %v128 = vpop.f32.mrb[0].mxu0
    %v129 = vadd.f32 0.0, %v128
    %v130 = vpop.f32.mrb[0].mxu0
    %v131 = vadd.f32 0.0, %v130
    %132 = vdwg.mxu0
    %v134 = vsel %vm53, %v41, 0
    %v136 = vsel %vm57, %v42, 0
    %v138 = vsel %vm57, %v46, 0
    %140 = vmatprep.subr.mxu0 %v138
    %141 = vmatpush1.msra.mxu0 %v136
    %142 = vmatprep.subr.mxu0 0.0
    %143 = vmatpush1.msra.mxu0 0.0
    %144 = vmatprep.subr.mxu0 0.0
    %145 = vmatpush1.msra.mxu0 0.0
    %146 = vmatprep.subr.mxu0 0.0
    %147 = vmatpush1.msra.mxu0 0.0
    %148 = vmatprep.subr.mxu0 0.0
    %149 = vmatpush1.msra.mxu0 0.0
    %150 = vmatprep.subr.mxu0 0.0
    %151 = vmatpush1.msra.mxu0 0.0
    %152 = vmatprep.subr.mxu0 0.0
    %153 = vmatpush1.msra.mxu0 0.0
    %154 = vmatprep.subr.mxu0 0.0
    %155 = vmatpush1.msra.mxu0 0.0
    %156 = vmatprep.subr.mxu0 0.0
    %157 = vmatpush1.msra.mxu0 0.0
    %158 = vmatprep.subr.mxu0 0.0
    %159 = vmatpush1.msra.mxu0 0.0
    %160 = vmatprep.subr.mxu0 0.0
    %161 = vmatpush1.msra.mxu0 0.0
    %162 = vmatprep.subr.mxu0 0.0
    %163 = vmatpush1.msra.mxu0 0.0
    %164 = vmatprep.subr.mxu0 0.0
    %165 = vmatpush1.msra.mxu0 0.0
    %166 = vmatprep.subr.mxu0 0.0
    %167 = vmatpush1.msra.mxu0 0.0
    %168 = vmatprep.subr.mxu0 0.0
    %169 = vmatpush1.msra.mxu0 0.0
    %170 = vmatprep.subr.mxu0 0.0
    %171 = vmatpush1.msra.mxu0 0.0
    %172 = vmatprep.subr.mxu0 0.0
    %173 = vmatpush1.msra.mxu0 0.0
    %174 = vmatprep.subr.mxu0 0.0
    %175 = vmatpush1.msra.mxu0 0.0
    %176 = vmatprep.subr.mxu0 0.0
    %177 = vmatpush1.msra.mxu0 0.0
    %178 = vmatprep.subr.mxu0 0.0
    %179 = vmatpush1.msra.mxu0 0.0
    %180 = vmatprep.subr.mxu0 0.0
    %181 = vmatpush1.msra.mxu0 0.0
    %182 = vmatprep.subr.mxu0 0.0
    %183 = vmatpush1.msra.mxu0 0.0
    %184 = vmatprep.subr.mxu0 0.0
    %185 = vmatpush1.msra.mxu0 0.0
    %186 = vmatprep.subr.mxu0 0.0
    %187 = vmatpush1.msra.mxu0 0.0
    %188 = vmatprep.subr.mxu0 0.0
    %189 = vmatpush1.msra.mxu0 0.0
    %190 = vmatprep.subr.mxu0 0.0
    %191 = vmatpush1.msra.mxu0 0.0
    %192 = vmatprep.subr.mxu0 0.0
    %193 = vmatpush1.msra.mxu0 0.0
    %194 = vmatprep.subr.mxu0 0.0
    %195 = vmatpush1.msra.mxu0 0.0
    %196 = vmatprep.subr.mxu0 0.0
    %197 = vmatpush1.msra.mxu0 0.0
    %198 = vmatprep.subr.mxu0 0.0
    %199 = vmatpush1.msra.mxu0 0.0
    %200 = vmatprep.subr.mxu0 0.0
    %201 = vmatpush1.msra.mxu0 0.0
    %202 = vmatprep.subr.mxu0 0.0
    %203 = vmatpush1.msra.mxu0 0.0
    %204 = vmatprep.mubr.f32.mxu0 0.0
    %205 = vmatmul.mubr.f32.gmra.mrb[0].mxu0 %v134
    %v206 = vpop.f32.mrb[0].mxu0
    %v207 = vadd.f32 %v129, %v206
    %v208 = vpop.f32.mrb[0].mxu0
    %v209 = vadd.f32 %v131, %v208
    %210 = vdwg.mxu0
    %s211 = scalar_lea.vmem [#allocation5], 8
    %v212 = vld [vmem:[%s211] sm:$0xf]
    %v213 = vld [vmem:[#allocation2] sm:$0xff]
    %v215 = vcombine.high %v213, %v213
    %216 = vrot.lane.b32.xlu0 %v213, 126
    %v217 = vpop.permute.xlu0 %216
    %218 = vrot.lane.b32.xlu0 %v215, 126
    %v219 = vpop.permute.xlu0 %218
    %vm220 = vcmask 1031168
    %v221 = vsel %vm220, %v217, %v219
    %v223 = vsel %vm53, %v212, 0
    %v225 = vsel %vm57, %v221, 0
    %v227 = vsel %vm57, %v219, 0
    %229 = vmatprep.subr.mxu0 %v227
    %230 = vmatpush1.msra.mxu0 %v225
    %231 = vmatprep.subr.mxu0 0.0
    %232 = vmatpush1.msra.mxu0 0.0
    %233 = vmatprep.subr.mxu0 0.0
    %234 = vmatpush1.msra.mxu0 0.0
    %235 = vmatprep.subr.mxu0 0.0
    %236 = vmatpush1.msra.mxu0 0.0
    %237 = vmatprep.subr.mxu0 0.0
    %238 = vmatpush1.msra.mxu0 0.0
    %239 = vmatprep.subr.mxu0 0.0
    %240 = vmatpush1.msra.mxu0 0.0
    %241 = vmatprep.subr.mxu0 0.0
    %242 = vmatpush1.msra.mxu0 0.0
    %243 = vmatprep.subr.mxu0 0.0
    %244 = vmatpush1.msra.mxu0 0.0
    %245 = vmatprep.subr.mxu0 0.0
    %246 = vmatpush1.msra.mxu0 0.0
    %247 = vmatprep.subr.mxu0 0.0
    %248 = vmatpush1.msra.mxu0 0.0
    %249 = vmatprep.subr.mxu0 0.0
    %250 = vmatpush1.msra.mxu0 0.0
    %251 = vmatprep.subr.mxu0 0.0
    %252 = vmatpush1.msra.mxu0 0.0
    %253 = vmatprep.subr.mxu0 0.0
    %254 = vmatpush1.msra.mxu0 0.0
    %255 = vmatprep.subr.mxu0 0.0
    %256 = vmatpush1.msra.mxu0 0.0
    %257 = vmatprep.subr.mxu0 0.0
    %258 = vmatpush1.msra.mxu0 0.0
    %259 = vmatprep.subr.mxu0 0.0
    %260 = vmatpush1.msra.mxu0 0.0
    %261 = vmatprep.subr.mxu0 0.0
    %262 = vmatpush1.msra.mxu0 0.0
    %263 = vmatprep.subr.mxu0 0.0
    %264 = vmatpush1.msra.mxu0 0.0
    %265 = vmatprep.subr.mxu0 0.0
    %266 = vmatpush1.msra.mxu0 0.0
    %267 = vmatprep.subr.mxu0 0.0
    %268 = vmatpush1.msra.mxu0 0.0
    %269 = vmatprep.subr.mxu0 0.0
    %270 = vmatpush1.msra.mxu0 0.0
    %271 = vmatprep.subr.mxu0 0.0
    %272 = vmatpush1.msra.mxu0 0.0
    %273 = vmatprep.subr.mxu0 0.0
    %274 = vmatpush1.msra.mxu0 0.0
    %275 = vmatprep.subr.mxu0 0.0
    %276 = vmatpush1.msra.mxu0 0.0
    %277 = vmatprep.subr.mxu0 0.0
    %278 = vmatpush1.msra.mxu0 0.0
    %279 = vmatprep.subr.mxu0 0.0
    %280 = vmatpush1.msra.mxu0 0.0
    %281 = vmatprep.subr.mxu0 0.0
    %282 = vmatpush1.msra.mxu0 0.0
    %283 = vmatprep.subr.mxu0 0.0
    %284 = vmatpush1.msra.mxu0 0.0
    %285 = vmatprep.subr.mxu0 0.0
    %286 = vmatpush1.msra.mxu0 0.0
    %287 = vmatprep.subr.mxu0 0.0
    %288 = vmatpush1.msra.mxu0 0.0
    %289 = vmatprep.subr.mxu0 0.0
    %290 = vmatpush1.msra.mxu0 0.0
    %291 = vmatprep.subr.mxu0 0.0
    %292 = vmatpush1.msra.mxu0 0.0
    %293 = vmatprep.mubr.f32.mxu0 0.0
    %294 = vmatmul.mubr.f32.gmra.mrb[0].mxu0 %v223
    %v295 = vpop.f32.mrb[0].mxu0
    %v296 = vadd.f32 0.0, %v295
    %v297 = vpop.f32.mrb[0].mxu0
    %v298 = vadd.f32 0.0, %v297
    %299 = vdwg.mxu0
    %v300 = vadd.f32 %v207, %v296
    %v301 = vadd.f32 %v209, %v298
    %v302 = vld [vmem:[%s2] sm:$0xf]
    %304 = vset.pattern.permute.xlu0 0
    %305 = vperm.xlu0 %304, %v302
    %v306 = vpop.permute.xlu0 %305
    %v308 = vadd.f32 %v300, %v306
    %v309 = vadd.f32 %v301, %v306
    %v312 = vcombine.low %v308, %v309
    %vm314 = vcmask 1031172
    %vm315 = vmor %vm314, %vm57
    %316 = vst.msk [vmem:[#allocation7] sm:$0xff] %vm315, %v312
    %vm317 = vcmask 1044464
    %318 = vst.msk [vmem:[#allocation7 + $0x4] sm:$0xf] %vm317, 0.0
    // Predicated region
    $region22: #{tpu_custom_call.1} parent=1 // pred_check
      _
    $region23: #{tpu_custom_call.1} parent=1 // pred_check_branch
      %320 = sbr.rel (0) target = $region25
    $region24: #{tpu_custom_call.1} parent=1 // pred_region
      %s322 = ssub.s32 128, 128
      %323 = vsyncadd [#allocation4], %s322
      %s325 = sshll.u32 [#allocation7], 4
      %s326 = int_to_ptr.vmem [resolvable:$true] %s325
      %328 = dma.vmem_to_hbm [thread:$0]  %s326, 128, %s3, [#allocation4]
    $region25: #{tpu_custom_call.1} parent=1 // pred_fallthru
      _
    // Predicated region
    $region26: #{tpu_custom_call.1} parent=1 // pred_check
      _
    $region27: #{tpu_custom_call.1} parent=1 // pred_check_branch
      %330 = sbr.rel (0) target = $region29
    $region28: #{tpu_custom_call.1} parent=1 // pred_region
      %331 = dma.done [#allocation4], 128
    $region29: #{tpu_custom_call.1} parent=1 // pred_fallthru
      _
    %332 = vsyncpa [#allocation3], 1
    %333 = vsyncpa [#allocation6], 1
    %334 = vsyncpa [#allocation4], 1

</llo_original>
